<compile_context>
chip_gen: v6e
topology: v6e:2x2x1
jax: 0.10.0
libtpu: 0.0.40
codegen_flags: <defaults>
</compile_context>

<pallas_src>
import functools

import numpy as np
import jax
import jax.numpy as jnp
from jax import lax
from jax.experimental import pallas as pl
from jax.experimental.pallas import tpu as pltpu


def _round_up(x, m):
    return ((x + m - 1) // m) * m


# -----------------------------------------------------------------------------
# Kernel 1: proxy SDF volume (min vertex distance -> relu(delta - d))
# -----------------------------------------------------------------------------
def _sdf_volume_kernel(pts_ref, vt_ref, phi_ref, dmin2_ref, *, delta, rows):
    # pts_ref : [rows, 3, G*G]  voxel centers for this z-row block (lane-dense)
    # vt_ref  : [tv, 3]         one chunk of (sentinel-padded) object vertices
    # phi_ref : [rows, G*G]     output proxy-SDF block (lane-dense store)
    # dmin2_ref: [rows, G*G]    running min squared distance across vertex chunks
    kv = pl.program_id(1)

    @pl.when(kv == 0)
    def _init():
        dmin2_ref[...] = jnp.full_like(dmin2_ref, jnp.inf)

    v = vt_ref[...]                                   # [tv, 3]
    vn = jnp.sum(v * v, axis=1, keepdims=True)        # [tv, 1]

    # One z-row (G*G lane-dense points) at a time keeps the [tv, G*G] distance
    # slab bounded in VMEM while the MXU N-dim stays >= 256.
    @pl.loop(0, rows)
    def _row(r):
        p = pts_ref[r]                                # [3, G*G]
        vp = jnp.dot(v, p, preferred_element_type=jnp.float32)   # [tv, G*G] (MXU)
        pn = jnp.sum(p * p, axis=0, keepdims=True)    # [1, G*G]
        d2 = jnp.maximum(vn + pn - 2.0 * vp, 0.0)     # [tv, G*G]
        d2min = jnp.min(d2, axis=0, keepdims=True)    # [1, G*G]
        dmin2_ref[pl.ds(r, 1), :] = jnp.minimum(dmin2_ref[pl.ds(r, 1), :], d2min)

    @pl.when(kv == pl.num_programs(1) - 1)
    def _finalize():
        phi_ref[...] = jnp.maximum(delta - jnp.sqrt(dmin2_ref[...]), 0.0)


def sdf_volume(pts_zyx, verts_norm, *, G, delta, tv=1024):
    """pts_zyx: [G, 3, G*G] voxel centers; verts_norm: [Nv, 3] -> phi: [G, G*G]."""
    GG = G * G
    rows = 8 if G % 8 == 0 else G                     # z-rows per output block
    nv = verts_norm.shape[0]
    tv = min(tv, _round_up(nv, 8))                    # vertex chunk (multiple of 8)
    nv_pad = _round_up(nv, tv)
    verts_norm = verts_norm.astype(jnp.float32)
    if nv_pad != nv:
        # far-away sentinel vertices never win the min-distance
        pad = jnp.full((nv_pad - nv, 3), 1e6, dtype=jnp.float32)
        verts_norm = jnp.concatenate([verts_norm, pad], axis=0)

    kern = functools.partial(_sdf_volume_kernel, delta=float(delta), rows=rows)
    return pl.pallas_call(
        kern,
        out_shape=jax.ShapeDtypeStruct((G, GG), jnp.float32),
        grid=(G // rows, nv_pad // tv),
        in_specs=[pl.BlockSpec((rows, 3, GG), lambda i, k: (i, 0, 0)),
                  pl.BlockSpec((tv, 3), lambda i, k: (k, 0))],
        out_specs=pl.BlockSpec((rows, GG), lambda i, k: (i, 0)),
        scratch_shapes=[pltpu.VMEM((rows, GG), jnp.float32)],
        compiler_params=pltpu.CompilerParams(
            dimension_semantics=("parallel", "arbitrary")),
    )(pts_zyx.astype(jnp.float32), verts_norm)


# -----------------------------------------------------------------------------
# Kernel 2: trilinear grid_sample (zeros padding, align_corners=False) + sum
# -----------------------------------------------------------------------------
def _grid_sample_sum_kernel(q_ref, volT_ref, out_ref, *, G, inv_rob):
    @pl.when(pl.program_id(0) == 0)
    def _init():
        out_ref[...] = jnp.zeros_like(out_ref)

    q = q_ref[...]                        # [tm, 3] rows of (x, y, z) in [-1, 1]
    volT = volT_ref[...]                  # [G*G, G]  (rows y*G + x, cols z)
    tm = q.shape[0]
    GG = G * G
    Gf = jnp.float32(G)

    # align_corners=False unnormalization: i = ((c + 1) * G - 1) / 2
    ix = ((q[:, 0] + 1.0) * Gf - 1.0) * 0.5           # [tm]
    iy = ((q[:, 1] + 1.0) * Gf - 1.0) * 0.5
    iz = ((q[:, 2] + 1.0) * Gf - 1.0) * 0.5

    # Arithmetic hat-function trilinear weights: max(0, 1 - |i - k|).
    # Truncating the hat at the volume border reproduces padding_mode='zeros';
    # far-outside points (incl. the wrapper's padding rows) get all-zero weights.
    kz = lax.broadcasted_iota(jnp.int32, (tm, G), 1).astype(jnp.float32)
    Wz = jnp.maximum(0.0, 1.0 - jnp.abs(iz[:, None] - kz))          # [tm, G]

    k = lax.broadcasted_iota(jnp.int32, (tm, GG), 1).astype(jnp.float32)
    ky = jnp.floor(k * (1.0 / G) + 1e-4)              # float "k // G" (no int div)
    kx = k - ky * Gf                                  # float "k % G"
    Wy = jnp.maximum(0.0, 1.0 - jnp.abs(iy[:, None] - ky))
    Wx = jnp.maximum(0.0, 1.0 - jnp.abs(ix[:, None] - kx))
    Wyx = Wy * Wx                                                    # [tm, G*G]

    # MXU contraction over the full G*G axis; result profile is only [tm, G].
    prof = jnp.dot(Wyx, volT, preferred_element_type=jnp.float32)    # [tm, G]
    vals = jnp.sum(prof * Wz, axis=-1)                               # [tm]
    if inv_rob is not None:
        frac = (vals * inv_rob) ** 2
        vals = frac * pl.reciprocal(frac + 1.0, approx=True)         # EUP divide
    out_ref[...] = out_ref[...] + jnp.sum(vals)


def grid_sample_sum(volT, queries, *, G, robustifier=None, tm=256):
    """volT: [G*G, G] (phi transposed); queries: [M, 3] -> scalar sum of samples."""
    m = queries.shape[0]
    tm = min(tm, _round_up(m, 8))
    mpad = _round_up(m, tm)
    queries = queries.astype(jnp.float32)
    if mpad != m:
        # padded queries land far outside [-1, 1] -> zero hat weights
        pad = jnp.full((mpad - m, 3), 1000.0, dtype=jnp.float32)
        queries = jnp.concatenate([queries, pad], axis=0)
    inv_rob = None if robustifier is None else 1.0 / float(robustifier)
    kern = functools.partial(_grid_sample_sum_kernel, G=G, inv_rob=inv_rob)
    out = pl.pallas_call(
        kern,
        out_shape=jax.ShapeDtypeStruct((1, 1), jnp.float32),
        grid=(mpad // tm,),
        in_specs=[pl.BlockSpec((tm, 3), lambda i: (i, 0)),
                  pl.BlockSpec((G * G, G), lambda i: (0, 0))],
        out_specs=pl.BlockSpec((1, 1), lambda i: (0, 0)),
        compiler_params=pltpu.CompilerParams(
            dimension_semantics=("arbitrary",)),
    )(queries, volT.astype(jnp.float32))
    return out[0, 0]


# -----------------------------------------------------------------------------
# SDFLossObjs forward (glue mirrors the PyTorch control flow)
# -----------------------------------------------------------------------------
class SDFLossObjs:
    def __init__(self, grid_size=32, robustifier=None, debugging=False):
        self.grid_size = grid_size
        self.robustifier = robustifier
        self.debugging = debugging

    @staticmethod
    def get_bounding_boxes(vertices):
        boxes = [jnp.stack([v.min(axis=0), v.max(axis=0)], axis=0) for v in vertices]
        return jnp.stack(boxes, axis=0)                              # [n, 2, 3]

    @staticmethod
    def check_overlap(b1, b2):
        if b1[0, 0] > b2[1, 0] or b2[0, 0] > b1[1, 0]:
            return False
        if b1[0, 1] > b2[1, 1] or b2[0, 1] > b1[1, 1]:
            return False
        if b1[0, 2] > b2[1, 2] or b2[0, 2] > b1[1, 2]:
            return False
        return True

    def filter_isolated_boxes(self, boxes_np):
        n = boxes_np.shape[0]
        flags = np.zeros(n, dtype=bool)
        for i in range(n):
            fi = False
            for j in range(n):
                if j != i and self.check_overlap(boxes_np[i], boxes_np[j]):
                    fi = True
            flags[i] = fi
        return flags

    def __call__(self, vertices, faces, scale_factor=0.2):
        num_objs = len(vertices)
        if num_objs == 1:
            return jnp.float32(0.0)

        boxes = self.get_bounding_boxes(vertices)
        # single host sync (required by the Python-level overlap branching)
        boxes_np = np.asarray(jax.device_get(boxes))
        flags = self.filter_isolated_boxes(boxes_np)
        if flags.sum() == 0:
            return jnp.float32(0.0)

        keep = np.where(flags)[0]
        verts = [vertices[i][None] for i in keep]                    # list of [1, Nv, 3]
        boxes_k = boxes_np[keep]                                     # host-side [K, 2, 3]
        centers = jnp.asarray(boxes_k.mean(axis=1), dtype=jnp.float32)[:, None, :]
        scales = jnp.asarray(
            (1.0 + scale_factor) * 0.5 * (boxes_k[:, 1] - boxes_k[:, 0]).max(axis=-1),
            dtype=jnp.float32)[:, None, None]

        G = self.grid_size
        GG = G * G
        # voxel centers for align_corners=False sampling, packed as [G, 3, G*G]
        c = (2.0 * jnp.arange(G, dtype=jnp.float32) + 1.0) / G - 1.0
        zz, yy, xx = jnp.meshgrid(c, c, c, indexing="ij")
        pts_zyx = jnp.stack([xx, yy, zz], axis=1).reshape(G, 3, GG)
        delta = 3.0 / G

        # Note: no host-side float() range asserts here -- they force one
        # device->host sync per object; bounds hold by construction of scales.
        volT_list = []
        for i in range(len(verts)):
            v_norm = (verts[i][0] - centers[i]) / scales[i]          # [Nv, 3]
            phi = sdf_volume(pts_zyx, v_norm, G=G, delta=delta)      # [G, G*G], >= 0
            volT_list.append(phi.T)                                  # [G*G, G]

        K = len(verts)
        loss = jnp.float32(0.0)
        for i in range(K):
            others = jnp.concatenate([v for j, v in enumerate(verts) if j != i], axis=1)
            queries = ((others - centers[i][None]) / scales[i][None]).reshape(-1, 3)
            s = grid_sample_sum(volT_list[i], queries, G=G,
                                robustifier=self.robustifier)
            loss = loss + s / float(K * K)
        return loss


if __name__ == "__main__":
    key = jax.random.PRNGKey(0)
    num_objs, Nv, F = 3, 128, 64
    ks = jax.random.split(key, num_objs + 1)
    offsets = jnp.array([[0.0, 0.0, 0.0],
                         [0.30, 0.20, 0.10],
                         [-0.25, 0.10, -0.10]], dtype=jnp.float32)
    vertices = [offsets[i] + 0.5 * jax.random.uniform(ks[i], (Nv, 3),
                                                      minval=-1.0, maxval=1.0,
                                                      dtype=jnp.float32)
                for i in range(num_objs)]
    faces = [jax.random.randint(ks[-1], (F, 3), 0, Nv, dtype=jnp.int32)
             for _ in range(num_objs)]  # unused by the proxy SDF

    module = SDFLossObjs(grid_size=16, robustifier=None)
    loss = module(vertices, faces)
    jax.block_until_ready(loss)
    print("KERNEL_OK")
</pallas_src>

<mosaic_0001>
module attributes {stable_mosaic.version = 11 : i64} {
  func.func @_sdf_volume_kernel(%arg0: i32, %arg1: i32, %arg2: memref<8x3x256xf32, #tpu.memory_space<vmem>>, %arg3: memref<128x3xf32, #tpu.memory_space<vmem>>, %arg4: memref<8x256xf32, #tpu.memory_space<vmem>>, %arg5: memref<8x256xf32, #tpu.memory_space<vmem>>) attributes {dimension_semantics = [#tpu.dimension_semantics<parallel>, #tpu.dimension_semantics<arbitrary>], iteration_bounds = array<i64: 2, 1>, scalar_prefetch = 0 : i64, scratch_operands = 1 : i64, tpu.core_type = #tpu.core_type<tc>, window_params = [{transform_indices = @transform_0, window_bounds = array<i64: 8, 3, 256>}, {transform_indices = @transform_1, window_bounds = array<i64: 128, 3>}, {transform_indices = @transform_2, window_bounds = array<i64: 8, 256>}]} {
    %c0_i32 = arith.constant 0 : i32
    %0 = arith.cmpi eq, %arg1, %c0_i32 : i32
    %1 = arith.extui %0 : i1 to i32
    %c0_i32_0 = arith.constant 0 : i32
    %2 = arith.cmpi ne, %1, %c0_i32_0 : i32
    scf.if %2 {
      %cst_6 = arith.constant 0x7F800000 : f32
      %11 = vector.broadcast %cst_6 : f32 to vector<8x256xf32>
      %c0_7 = arith.constant 0 : index
      %c0_8 = arith.constant 0 : index
      %12 = vector.load %arg5[%c0_7, %c0_8] : memref<8x256xf32, #tpu.memory_space<vmem>>, vector<8x256xf32>
      tpu.vector_store %arg5[%c0_7, %c0_8], %11 {strides = array<i32>} : memref<8x256xf32, #tpu.memory_space<vmem>>, vector<8x256xf32>,
    } else {
    }
    %c0 = arith.constant 0 : index
    %c0_1 = arith.constant 0 : index
    %3 = vector.load %arg3[%c0, %c0_1] : memref<128x3xf32, #tpu.memory_space<vmem>>, vector<128x3xf32>
    %4 = arith.mulf %3, %3 : vector<128x3xf32>
    %cst = arith.constant dense<0.000000e+00> : vector<128xf32>
    %5 = vector.multi_reduction <add>, %4, %cst [1] : vector<128x3xf32> to vector<128xf32>
    %6 = vector.shape_cast %5 : vector<128xf32> to vector<128x1xf32>
    %c0_i32_2 = arith.constant 0 : i32
    %c8_i32 = arith.constant 8 : i32
    %7 = arith.addi %c0_i32_2, %c8_i32 : i32
    %c1_i32 = arith.constant 1 : i32
    scf.for %arg6 = %c0_i32_2 to %7 step %c1_i32  : i32 {
      %c1_i32_6 = arith.constant 1 : i32
      %11 = arith.muli %arg6, %c1_i32_6 : i32
      %c0_i32_7 = arith.constant 0 : i32
      %12 = arith.addi %c0_i32_7, %11 : i32
      %13 = arith.index_cast %12 : i32 to index
      %c0_8 = arith.constant 0 : index
      %c0_9 = arith.constant 0 : index
      %14 = vector.load %arg2[%13, %c0_8, %c0_9] : memref<8x3x256xf32, #tpu.memory_space<vmem>>, vector<1x3x256xf32>
      %15 = vector.shape_cast %14 : vector<1x3x256xf32> to vector<3x256xf32>
      %cst_10 = arith.constant dense<0.000000e+00> : vector<128x256xf32>
      %16 = tpu.matmul %3, %15, %cst_10 {dimension_numbers = #tpu.dot_dimension_numbers<[1], [0], [0], [1], [0, 0, 1, 1], [], []>} : vector<128x3xf32>, vector<3x256xf32>, vector<128x256xf32> -> vector<128x256xf32>
      %17 = arith.mulf %15, %15 : vector<3x256xf32>
      %cst_11 = arith.constant dense<0.000000e+00> : vector<256xf32>
      %18 = vector.multi_reduction <add>, %17, %cst_11 [0] : vector<3x256xf32> to vector<256xf32>
      %19 = vector.shape_cast %18 : vector<256xf32> to vector<1x256xf32>
      %20 = vector.broadcast %6 : vector<128x1xf32> to vector<128x256xf32>
      %21 = vector.broadcast %19 : vector<1x256xf32> to vector<128x256xf32>
      %22 = arith.addf %20, %21 : vector<128x256xf32>
      %cst_12 = arith.constant 2.000000e+00 : f32
      %23 = vector.broadcast %cst_12 : f32 to vector<128x256xf32>
      %24 = arith.mulf %23, %16 : vector<128x256xf32>
      %25 = arith.subf %22, %24 : vector<128x256xf32>
      %cst_13 = arith.constant 0.000000e+00 : f32
      %26 = vector.broadcast %cst_13 : f32 to vector<128x256xf32>
      %27 = arith.maximumf %25, %26 : vector<128x256xf32>
      %cst_14 = arith.constant dense<0x7F800000> : vector<256xf32>
      %28 = vector.multi_reduction <minimumf>, %27, %cst_14 [0] : vector<128x256xf32> to vector<256xf32>
      %29 = vector.shape_cast %28 : vector<256xf32> to vector<1x256xf32>
      %30 = arith.index_cast %12 : i32 to index
      %c0_15 = arith.constant 0 : index
      %31 = vector.load %arg5[%30, %c0_15] : memref<8x256xf32, #tpu.memory_space<vmem>>, vector<1x256xf32>
      %32 = arith.minimumf %31, %29 : vector<1x256xf32>
      %33 = arith.index_cast %12 : i32 to index
      %c0_16 = arith.constant 0 : index
      %34 = vector.load %arg5[%33, %c0_16] : memref<8x256xf32, #tpu.memory_space<vmem>>, vector<1x256xf32>
      tpu.vector_store %arg5[%33, %c0_16], %32 {strides = array<i32>} : memref<8x256xf32, #tpu.memory_space<vmem>>, vector<1x256xf32>,
    }
    %c8_i32_3 = arith.constant 8 : i32
    %c0_i32_4 = arith.constant 0 : i32
    %8 = arith.cmpi eq, %arg1, %c0_i32_4 : i32
    %9 = arith.extui %8 : i1 to i32
    %c0_i32_5 = arith.constant 0 : i32
    %10 = arith.cmpi ne, %9, %c0_i32_5 : i32
    scf.if %10 {
      %c0_6 = arith.constant 0 : index
      %c0_7 = arith.constant 0 : index
      %11 = vector.load %arg5[%c0_6, %c0_7] : memref<8x256xf32, #tpu.memory_space<vmem>>, vector<8x256xf32>
      %12 = math.sqrt %11 : vector<8x256xf32>
      %cst_8 = arith.constant 1.875000e-01 : f32
      %13 = vector.broadcast %cst_8 : f32 to vector<8x256xf32>
      %14 = arith.subf %13, %12 : vector<8x256xf32>
      %cst_9 = arith.constant 0.000000e+00 : f32
      %15 = vector.broadcast %cst_9 : f32 to vector<8x256xf32>
      %16 = arith.maximumf %14, %15 : vector<8x256xf32>
      %c0_10 = arith.constant 0 : index
      %c0_11 = arith.constant 0 : index
      %17 = vector.load %arg4[%c0_10, %c0_11] : memref<8x256xf32, #tpu.memory_space<vmem>>, vector<8x256xf32>
      tpu.vector_store %arg4[%c0_10, %c0_11], %16 {strides = array<i32>} : memref<8x256xf32, #tpu.memory_space<vmem>>, vector<8x256xf32>,
    } else {
    }
    return
  }
  func.func @transform_0(%arg0: i32, %arg1: i32) -> (i32, i32, i32) {
    %c0_i32 = arith.constant 0 : i32
    %c0_i32_0 = arith.constant 0 : i32
    %c0_i32_1 = arith.constant 0 : i32
    return %arg0, %c0_i32, %c0_i32_0 : i32, i32, i32
  }
  func.func @transform_1(%arg0: i32, %arg1: i32) -> (i32, i32) {
    %c0_i32 = arith.constant 0 : i32
    %c0_i32_0 = arith.constant 0 : i32
    return %arg1, %c0_i32 : i32, i32
  }
  func.func @transform_2(%arg0: i32, %arg1: i32) -> (i32, i32) {
    %c0_i32 = arith.constant 0 : i32
    %c0_i32_0 = arith.constant 0 : i32
    return %arg0, %c0_i32 : i32, i32
  }
}

</mosaic_0001>

<llo_original>
// kernel: tpu_custom_call.1
$region0: #{tpu_custom_call.1}
  #allocation0 [shape = 'u32[]', space=smem, size = 0x4, offset = 0x4, fixed_abs, tag = 'smem constant byte address 0x4 - core index']
  #allocation1 [shape = 'u32[144,128]{1,0:T(1,128)}', space=vmem, size = 0x12000, scoped, tag = 'internal scratch']
  #allocation2 [shape = 'f32[8,256]{1,0:T(8,128)}', space=vmem, size = 0x2000, scoped, tag = 'scratch operand']
  %s0 = inlined_call_operand.vmem [shape: f32[16,3,256], index: 0, kind: input, shape index: {}]
  %s1 = inlined_call_operand.vmem [shape: f32[128,3], index: 1, kind: input, shape index: {}]
  %s2 = inlined_call_operand.hbm [shape: f32[16,256], index: 2, kind: output, shape index: {}]
  %s3 = sld [smem:[#allocation0]]
  $region56: #{tpu_custom_call.1} parent=0
    _
  %s5 = ssub.s32 1, %s3
  %s6 = scalar_select 0, %s5, %s3
  $region1: #{tpu_custom_call.1} parent=0
    #allocation3 [shape = 'u8[16384]{0}', space=vmem, size = 0x4000, scoped, tag = 'output window, operand 0']
    #allocation4 [shape = 's32[2]{0}', space=sflag, size = 0x8, scoped, tag = 'scoped memory for tpu_custom_call.1']
    %7 = vsyncpa [#allocation4], 0
    %s8 = scalar_lea.sflag [#allocation4], 1
    %9 = vsyncpa %s8, 0
    loop: start=0, step=1, limit=4
    $region2: #{tpu_custom_call.1} parent=1 // loop_pre_header
      _
    $region3: #{tpu_custom_call.1} parent=1 // loop_header
      %s11 = sphi 0, %s15
      %p12 = scmp.ge.s32.totalorder %s11, 4
      %s18 = sphi 0, %s30
      %s19 = sphi 0, %s26
      %s20 = sphi 0, %s18
      %s21 = sphi 0, %s19
      %s22 = sphi 0, %s20
      %s23 = sphi 0, %s21
      %s33 = sphi 0, %s35
      %s36 = sphi 0, %s33
      %s37 = sphi 0, %s36
      %s53 = sphi 0, %s37
      %s59 = sphi 0, %s61
      %s62 = sphi 0, %s59
      %s63 = sphi 0, %s62
      %s79 = sphi 0, %s63
      %s85 = sphi 0, %s87
      %s88 = sphi 0, %s85
      %s89 = sphi 0, %s88
      %s105 = sphi 0, %s89
    $region4: #{tpu_custom_call.1} parent=1 // loop_header_branch
      %14 = sbr.rel (%p12) target = $region8
    $region5: #{tpu_custom_call.1} parent=1 // loop_body
      %s16 = ssub.s32 %s11, 1
      %s17 = ssub.s32 %s11, 2
      %s24 = sadd.s32 1, %s19
      %p25 = scmp.ge.s32.totalorder %s24, 1
      %s26 = scalar_select %p25, 0, %s24
      %s27 = sadd.s32 1, %s18
      %s28 = scalar_select %p25, %s27, %s18
      %p29 = scmp.ge.s32.totalorder %s28, 2
      %s30 = scalar_select %p29, 0, %s28
      %s31 = ssub.s32 %s18, %s30
      %p32 = scmp.eq.s32.totalorder %s31, 0
      %s34 = sadd.s32 %s33, 1
      %s35 = scalar_select %p32, %s33, %s34
      %p38 = pneg %p32
      %p39 = scmp.eq.s32.totalorder %s11, 1
      %p40 = por %p38, %p39
      %p41 = scmp.ne.s32.totalorder %s33, %s36
      %p42 = scmp.eq.s32.totalorder %s11, 0
      %p43 = por %p41, %p42
      %p44 = scmp.ne.s32.totalorder %s33, %s36
      %p45 = scmp.eq.s32.totalorder %s16, 1
      %p46 = por %p44, %p45
      %p47 = scmp.ne.s32.totalorder %s36, %s37
      %p48 = scmp.eq.s32.totalorder %s16, 0
      %p49 = por %p47, %p48
      %p50 = scmp.ne.s32.totalorder %s36, %s37
      %p51 = scmp.eq.s32.totalorder %s17, 1
      %p52 = por %p50, %p51
      %p54 = scmp.ne.s32.totalorder %s37, %s53
      %p55 = scmp.eq.s32.totalorder %s17, 0
      %p56 = por %p54, %p55
      %s57 = ssub.s32 %s19, %s26
      %p58 = scmp.eq.s32.totalorder %s57, 0
      %s60 = sadd.s32 %s59, 1
      %s61 = scalar_select %p58, %s59, %s60
      %p64 = pneg %p58
      %p65 = scmp.eq.s32.totalorder %s11, 1
      %p66 = por %p64, %p65
      %p67 = scmp.ne.s32.totalorder %s59, %s62
      %p68 = scmp.eq.s32.totalorder %s11, 0
      %p69 = por %p67, %p68
      %p70 = scmp.ne.s32.totalorder %s59, %s62
      %p71 = scmp.eq.s32.totalorder %s16, 1
      %p72 = por %p70, %p71
      %p73 = scmp.ne.s32.totalorder %s62, %s63
      %p74 = scmp.eq.s32.totalorder %s16, 0
      %p75 = por %p73, %p74
      %p76 = scmp.ne.s32.totalorder %s62, %s63
      %p77 = scmp.eq.s32.totalorder %s17, 1
      %p78 = por %p76, %p77
      %p80 = scmp.ne.s32.totalorder %s63, %s79
      %p81 = scmp.eq.s32.totalorder %s17, 0
      %p82 = por %p80, %p81
      %s83 = ssub.s32 %s18, %s30
      %p84 = scmp.eq.s32.totalorder %s83, 0
      %s86 = sadd.s32 %s85, 1
      %s87 = scalar_select %p84, %s85, %s86
      %p90 = pneg %p84
      %p91 = scmp.eq.s32.totalorder %s11, 1
      %p92 = por %p90, %p91
      %p93 = scmp.ne.s32.totalorder %s85, %s88
      %p94 = scmp.eq.s32.totalorder %s11, 0
      %p95 = por %p93, %p94
      %p96 = scmp.ne.s32.totalorder %s85, %s88
      %p97 = scmp.eq.s32.totalorder %s16, 1
      %p98 = por %p96, %p97
      %p99 = scmp.ne.s32.totalorder %s88, %s89
      %p100 = scmp.eq.s32.totalorder %s16, 0
      %p101 = por %p99, %p100
      %p102 = scmp.ne.s32.totalorder %s88, %s89
      %p103 = scmp.eq.s32.totalorder %s17, 1
      %p104 = por %p102, %p103
      %p106 = scmp.ne.s32.totalorder %s89, %s105
      %p107 = scmp.eq.s32.totalorder %s17, 0
      %p108 = por %p106, %p107
      %p109 = scmp.le.s32.totalorder 1, %s11
      %p110 = scmp.lt.s32.totalorder %s11, 3
      %p111 = pnand %p109, %p110
      %p112 = pneg %p111
      // Predicated region
      $region9: #{tpu_custom_call.1} parent=5 // pred_check
        _
      $region10: #{tpu_custom_call.1} parent=5 // pred_check_branch
        %114 = sbr.rel (%p111) target = $region12
      $region11: #{tpu_custom_call.1} parent=5 // pred_region
        %s115 = ssub.s32 %s11, 1
        // Predicated region
        $region13: #{tpu_custom_call.1} parent=11 // pred_check
          %p116 = pneg %p75
        $region14: #{tpu_custom_call.1} parent=11 // pred_check_branch
          %118 = sbr.rel (%p116) target = $region16
        $region15: #{tpu_custom_call.1} parent=11 // pred_region
          %s119 = smul.u32 16, %s21
          %p120 = scmp.lt.s32.totalorder %s119, 15
          %s121 = scalar_select %p120, %s119, 15
          %s122 = smul.addr %s121, 8
          %s123 = scalar_lea.vmem %s1, %s122
          %s124 = smul.u32 16, %s21
        $region16: #{tpu_custom_call.1} parent=11 // pred_fallthru
          _
      $region12: #{tpu_custom_call.1} parent=5 // pred_fallthru
        _
      %p125 = scmp.lt.s32.totalorder %s11, 2
      // Predicated region
      $region17: #{tpu_custom_call.1} parent=5 // pred_check
        %p126 = pneg %p125
      $region18: #{tpu_custom_call.1} parent=5 // pred_check_branch
        %128 = sbr.rel (%p126) target = $region20
      $region19: #{tpu_custom_call.1} parent=5 // pred_region
        // Predicated region
        $region21: #{tpu_custom_call.1} parent=19 // pred_check
          %p129 = pneg %p43
        $region22: #{tpu_custom_call.1} parent=19 // pred_check_branch
          %131 = sbr.rel (%p129) target = $region24
        $region23: #{tpu_custom_call.1} parent=19 // pred_region
          %s132 = smul.u32 8, %s18
          %p133 = scmp.lt.s32.totalorder %s132, 15
          %s134 = scalar_select %p133, %s132, 15
          %s135 = smul.addr %s134, 2
          %s136 = smul.addr %s135, 4
          %s137 = scalar_lea.vmem %s0, %s136
          %s138 = smul.u32 8, %s18
        $region24: #{tpu_custom_call.1} parent=19 // pred_fallthru
          _
      $region20: #{tpu_custom_call.1} parent=5 // pred_fallthru
        _
      %p139 = scmp.le.s32.totalorder 1, %s11
      %p140 = scmp.lt.s32.totalorder %s11, 3
      %p141 = pnand %p139, %p140
      %p142 = pneg %p141
      // Predicated region
      $region25: #{tpu_custom_call.1} parent=5 // pred_check
        _
      $region26: #{tpu_custom_call.1} parent=5 // pred_check_branch
        %144 = sbr.rel (%p141) target = $region28
      $region27: #{tpu_custom_call.1} parent=5 // pred_region
        %s145 = ssub.s32 %s11, 1
        %s146 = smul.u32 8, %s20
        %p147 = scmp.lt.s32.totalorder %s146, 15
        %s148 = scalar_select %p147, %s146, 15
        %s149 = smul.addr %s148, 2
        %s150 = smul.addr %s149, 4
        %s151 = scalar_lea.vmem %s0, %s150
        %p152 = pneg %p49
        %p153 = pneg %p46
        %s154 = smul.u32 16, %s21
        %p155 = scmp.lt.s32.totalorder %s154, 15
        %s156 = scalar_select %p155, %s154, 15
        %s157 = smul.addr %s156, 8
        %s158 = scalar_lea.vmem %s1, %s157
        %p159 = pneg %p75
        %p160 = pneg %p72
        %p161 = pneg %p101
        %p162 = pneg %p98
        %s163 = sand.u32 %s88, 1
        %s164 = scalar_lea.sflag [#allocation4], %s163
        %s165 = sand.u32 %s88, 1
        %s166 = smul.addr %s165, 16
        %s167 = scalar_lea.vmem [#allocation3], %s166
        %s168 = smul.u32 8, %s20
        %p169 = scmp.lt.s32.totalorder %s168, 15
        %s170 = scalar_select %p169, %s168, 15
        %s171 = smul.addr %s170, 2
        %s172 = smul.addr %s171, 4
        %s173 = scalar_lea.vmem %s0, %s172
        %s174 = smul.u32 8, %s20
        %s175 = smul.u32 16, %s21
        %p176 = scmp.lt.s32.totalorder %s175, 15
        %s177 = scalar_select %p176, %s175, 15
        %s178 = smul.addr %s177, 8
        %s179 = scalar_lea.vmem %s1, %s178
        %s180 = smul.u32 16, %s21
        %p181 = scmp.eq.s32.totalorder %s21, 0
        // Predicated region
        $region29: #{tpu_custom_call.1} parent=27 // pred_check
          %p182 = pneg %p181
        $region30: #{tpu_custom_call.1} parent=27 // pred_check_branch
          %184 = sbr.rel (%p182) target = $region32
        $region31: #{tpu_custom_call.1} parent=27 // pred_region
          %185 = vst [vmem:[#allocation2] sm:$0xff] inf
          %186 = vst [vmem:[#allocation2 + $0x8] sm:$0xff] inf
        $region32: #{tpu_custom_call.1} parent=27 // pred_fallthru
          _
        %v187 = vld [vmem:[%s179] sm:$0xff]
        %v188 = vld [vmem:[%s179 + $0x8] sm:$0xff]
        %v189 = vld [vmem:[%s179 + $0x10] sm:$0xff]
        %v190 = vld [vmem:[%s179 + $0x18] sm:$0xff]
        %v191 = vld [vmem:[%s179 + $0x20] sm:$0xff]
        %v192 = vld [vmem:[%s179 + $0x28] sm:$0xff]
        %v193 = vld [vmem:[%s179 + $0x30] sm:$0xff]
        %v194 = vld [vmem:[%s179 + $0x38] sm:$0xff]
        %v195 = vld [vmem:[%s179 + $0x40] sm:$0xff]
        %v196 = vld [vmem:[%s179 + $0x48] sm:$0xff]
        %v197 = vld [vmem:[%s179 + $0x50] sm:$0xff]
        %v198 = vld [vmem:[%s179 + $0x58] sm:$0xff]
        %v199 = vld [vmem:[%s179 + $0x60] sm:$0xff]
        %v200 = vld [vmem:[%s179 + $0x68] sm:$0xff]
        %v201 = vld [vmem:[%s179 + $0x70] sm:$0xff]
        %v202 = vld [vmem:[%s179 + $0x78] sm:$0xff]
        %v203 = vmul.f32 %v187, %v187
        %v204 = vmul.f32 %v188, %v188
        %v205 = vmul.f32 %v189, %v189
        %v206 = vmul.f32 %v190, %v190
        %v207 = vmul.f32 %v191, %v191
        %v208 = vmul.f32 %v192, %v192
        %v209 = vmul.f32 %v193, %v193
        %v210 = vmul.f32 %v194, %v194
        %v211 = vmul.f32 %v195, %v195
        %v212 = vmul.f32 %v196, %v196
        %v213 = vmul.f32 %v197, %v197
        %v214 = vmul.f32 %v198, %v198
        %v215 = vmul.f32 %v199, %v199
        %v216 = vmul.f32 %v200, %v200
        %v217 = vmul.f32 %v201, %v201
        %v218 = vmul.f32 %v202, %v202
        %vm219 = vcmask 23552
        %v220 = vsel %vm219, %v203, 0.0
        %221 = vadd.xlane.f32.xlu0 %v220
        %v222 = vpop.xlane.xlu0 %221
        %v223 = vsel %vm219, %v204, 0.0
        %224 = vadd.xlane.f32.xlu0 %v223
        %v225 = vpop.xlane.xlu0 %224
        %v226 = vsel %vm219, %v205, 0.0
        %227 = vadd.xlane.f32.xlu0 %v226
        %v228 = vpop.xlane.xlu0 %227
        %v229 = vsel %vm219, %v206, 0.0
        %230 = vadd.xlane.f32.xlu0 %v229
        %v231 = vpop.xlane.xlu0 %230
        %v232 = vsel %vm219, %v207, 0.0
        %233 = vadd.xlane.f32.xlu0 %v232
        %v234 = vpop.xlane.xlu0 %233
        %v235 = vsel %vm219, %v208, 0.0
        %236 = vadd.xlane.f32.xlu0 %v235
        %v237 = vpop.xlane.xlu0 %236
        %v238 = vsel %vm219, %v209, 0.0
        %239 = vadd.xlane.f32.xlu0 %v238
        %v240 = vpop.xlane.xlu0 %239
        %v241 = vsel %vm219, %v210, 0.0
        %242 = vadd.xlane.f32.xlu0 %v241
        %v243 = vpop.xlane.xlu0 %242
        %v244 = vsel %vm219, %v211, 0.0
        %245 = vadd.xlane.f32.xlu0 %v244
        %v246 = vpop.xlane.xlu0 %245
        %v247 = vsel %vm219, %v212, 0.0
        %248 = vadd.xlane.f32.xlu0 %v247
        %v249 = vpop.xlane.xlu0 %248
        %v250 = vsel %vm219, %v213, 0.0
        %251 = vadd.xlane.f32.xlu0 %v250
        %v252 = vpop.xlane.xlu0 %251
        %v253 = vsel %vm219, %v214, 0.0
        %254 = vadd.xlane.f32.xlu0 %v253
        %v255 = vpop.xlane.xlu0 %254
        %v256 = vsel %vm219, %v215, 0.0
        %257 = vadd.xlane.f32.xlu0 %v256
        %v258 = vpop.xlane.xlu0 %257
        %v259 = vsel %vm219, %v216, 0.0
        %260 = vadd.xlane.f32.xlu0 %v259
        %v261 = vpop.xlane.xlu0 %260
        %v262 = vsel %vm219, %v217, 0.0
        %263 = vadd.xlane.f32.xlu0 %v262
        %v264 = vpop.xlane.xlu0 %263
        %v265 = vsel %vm219, %v218, 0.0
        %266 = vadd.xlane.f32.xlu0 %v265
        %v267 = vpop.xlane.xlu0 %266
        loop: start=0, step=1, limit=8
        $region33: #{tpu_custom_call.1} parent=27 // loop_pre_header
          _
        $region34: #{tpu_custom_call.1} parent=27 // loop_header
          %s269 = sphi 0, %s273
          %p270 = scmp.ge.s32.totalorder %s269, 8
        $region35: #{tpu_custom_call.1} parent=27 // loop_header_branch
          %272 = sbr.rel (%p270) target = $region39
        $region36: #{tpu_custom_call.1} parent=27 // loop_body
          %s274 = smul.u32 %s269, 2
          %s275 = smul.addr %s274, 4
          %s276 = scalar_lea.vmem %s173, %s275
          %v277 = vld [vmem:[%s276] sm:$0x77]
          %v279 = vcombine.high %v277, %v277
          %v281 = vsel %vm219, %v187, 0
          %v284 = vsel %vm219, %v188, 0
          %v287 = vsel %vm219, %v189, 0
          %v290 = vsel %vm219, %v190, 0
          %v293 = vsel %vm219, %v191, 0
          %v296 = vsel %vm219, %v192, 0
          %v299 = vsel %vm219, %v193, 0
          %v302 = vsel %vm219, %v194, 0
          %v305 = vsel %vm219, %v195, 0
          %v308 = vsel %vm219, %v196, 0
          %v311 = vsel %vm219, %v197, 0
          %v314 = vsel %vm219, %v198, 0
          %v317 = vsel %vm219, %v199, 0
          %v320 = vsel %vm219, %v200, 0
          %v323 = vsel %vm219, %v201, 0
          %v326 = vsel %vm219, %v202, 0
          %vm328 = vcmask 1042432
          %v329 = vsel %vm328, %v277, 0
          %v331 = vsel %vm328, %v279, 0
          %333 = vmatprep.subr.mxu0 0.0
          %334 = vmatpush1.msra.mxu0 0.0
          %335 = vmatprep.subr.mxu0 0.0
          %336 = vmatpush1.msra.mxu0 0.0
          %337 = vmatprep.subr.mxu0 0.0
          %338 = vmatpush1.msra.mxu0 0.0
          %339 = vmatprep.subr.mxu0 0.0
          %340 = vmatpush1.msra.mxu0 0.0
          %341 = vmatprep.subr.mxu0 0.0
          %342 = vmatpush1.msra.mxu0 0.0
          %343 = vmatprep.subr.mxu0 0.0
          %344 = vmatpush1.msra.mxu0 0.0
          %345 = vmatprep.subr.mxu0 0.0
          %346 = vmatpush1.msra.mxu0 0.0
          %347 = vmatprep.subr.mxu0 0.0
          %348 = vmatpush1.msra.mxu0 0.0
          %349 = vmatprep.subr.mxu0 0.0
          %350 = vmatpush1.msra.mxu0 0.0
          %351 = vmatprep.subr.mxu0 0.0
          %352 = vmatpush1.msra.mxu0 0.0
          %353 = vmatprep.subr.mxu0 0.0
          %354 = vmatpush1.msra.mxu0 0.0
          %355 = vmatprep.subr.mxu0 0.0
          %356 = vmatpush1.msra.mxu0 0.0
          %357 = vmatprep.subr.mxu0 0.0
          %358 = vmatpush1.msra.mxu0 0.0
          %359 = vmatprep.subr.mxu0 0.0
          %360 = vmatpush1.msra.mxu0 0.0
          %361 = vmatprep.subr.mxu0 0.0
          %362 = vmatpush1.msra.mxu0 0.0
          %363 = vmatprep.subr.mxu0 %v331
          %364 = vmatpush1.msra.mxu0 %v329
          %365 = vmatprep.subr.mxu0 0.0
          %366 = vmatpush2.msra.mxu0 0.0
          %367 = vmatprep.subr.mxu0 0.0
          %368 = vmatpush2.msra.mxu0 0.0
          %369 = vmatprep.subr.mxu0 0.0
          %370 = vmatpush2.msra.mxu0 0.0
          %371 = vmatprep.subr.mxu0 0.0
          %372 = vmatpush2.msra.mxu0 0.0
          %373 = vmatprep.subr.mxu0 0.0
          %374 = vmatpush2.msra.mxu0 0.0
          %375 = vmatprep.subr.mxu0 0.0
          %376 = vmatpush2.msra.mxu0 0.0
          %377 = vmatprep.subr.mxu0 0.0
          %378 = vmatpush2.msra.mxu0 0.0
          %379 = vmatprep.subr.mxu0 0.0
          %380 = vmatpush2.msra.mxu0 0.0
          %381 = vmatprep.subr.mxu0 0.0
          %382 = vmatpush2.msra.mxu0 0.0
          %383 = vmatprep.subr.mxu0 0.0
          %384 = vmatpush2.msra.mxu0 0.0
          %385 = vmatprep.subr.mxu0 0.0
          %386 = vmatpush2.msra.mxu0 0.0
          %387 = vmatprep.subr.mxu0 0.0
          %388 = vmatpush2.msra.mxu0 0.0
          %389 = vmatprep.subr.mxu0 0.0
          %390 = vmatpush2.msra.mxu0 0.0
          %391 = vmatprep.subr.mxu0 0.0
          %392 = vmatpush2.msra.mxu0 0.0
          %393 = vmatprep.subr.mxu0 0.0
          %394 = vmatpush2.msra.mxu0 0.0
          %395 = vmatprep.subr.mxu0 0.0
          %396 = vmatpush2.msra.mxu0 0.0
          %397 = vmatprep.mubr.f32.mxu0 0.0
          %398 = vmatmul.mubr.f32.gmra.mxu0 %v281
          %v399 = vpop.f32.mrf.mxu0
          %v400 = vadd.f32 0.0, %v399
          %v401 = vpop.f32.mrf.mxu0
          %v402 = vadd.f32 0.0, %v401
          %403 = vmatprep.mubr.f32.mxu0 0.0
          %404 = vmatmul.mubr.f32.gmra.mxu0 %v284
          %v405 = vpop.f32.mrf.mxu0
          %v406 = vadd.f32 0.0, %v405
          %v407 = vpop.f32.mrf.mxu0
          %v408 = vadd.f32 0.0, %v407
          %409 = vmatprep.mubr.f32.mxu0 0.0
          %410 = vmatmul.mubr.f32.gmra.mxu0 %v287
          %v411 = vpop.f32.mrf.mxu0
          %v412 = vadd.f32 0.0, %v411
          %v413 = vpop.f32.mrf.mxu0
          %v414 = vadd.f32 0.0, %v413
          %415 = vmatprep.mubr.f32.mxu0 0.0
          %416 = vmatmul.mubr.f32.gmra.mxu0 %v290
          %v417 = vpop.f32.mrf.mxu0
          %v418 = vadd.f32 0.0, %v417
          %v419 = vpop.f32.mrf.mxu0
          %v420 = vadd.f32 0.0, %v419
          %421 = vmatprep.mubr.f32.mxu0 0.0
          %422 = vmatmul.mubr.f32.gmra.mxu0 %v293
          %v423 = vpop.f32.mrf.mxu0
          %v424 = vadd.f32 0.0, %v423
          %v425 = vpop.f32.mrf.mxu0
          %v426 = vadd.f32 0.0, %v425
          %427 = vmatprep.mubr.f32.mxu0 0.0
          %428 = vmatmul.mubr.f32.gmra.mxu0 %v296
          %v429 = vpop.f32.mrf.mxu0
          %v430 = vadd.f32 0.0, %v429
          %v431 = vpop.f32.mrf.mxu0
          %v432 = vadd.f32 0.0, %v431
          %433 = vmatprep.mubr.f32.mxu0 0.0
          %434 = vmatmul.mubr.f32.gmra.mxu0 %v299
          %v435 = vpop.f32.mrf.mxu0
          %v436 = vadd.f32 0.0, %v435
          %v437 = vpop.f32.mrf.mxu0
          %v438 = vadd.f32 0.0, %v437
          %439 = vmatprep.mubr.f32.mxu0 0.0
          %440 = vmatmul.mubr.f32.gmra.mxu0 %v302
          %v441 = vpop.f32.mrf.mxu0
          %v442 = vadd.f32 0.0, %v441
          %v443 = vpop.f32.mrf.mxu0
          %v444 = vadd.f32 0.0, %v443
          %445 = vmatprep.mubr.f32.mxu0 0.0
          %446 = vmatmul.mubr.f32.gmra.mxu0 %v305
          %v447 = vpop.f32.mrf.mxu0
          %v448 = vadd.f32 0.0, %v447
          %v449 = vpop.f32.mrf.mxu0
          %v450 = vadd.f32 0.0, %v449
          %451 = vmatprep.mubr.f32.mxu0 0.0
          %452 = vmatmul.mubr.f32.gmra.mxu0 %v308
          %v453 = vpop.f32.mrf.mxu0
          %v454 = vadd.f32 0.0, %v453
          %v455 = vpop.f32.mrf.mxu0
          %v456 = vadd.f32 0.0, %v455
          %457 = vmatprep.mubr.f32.mxu0 0.0
          %458 = vmatmul.mubr.f32.gmra.mxu0 %v311
          %v459 = vpop.f32.mrf.mxu0
          %v460 = vadd.f32 0.0, %v459
          %v461 = vpop.f32.mrf.mxu0
          %v462 = vadd.f32 0.0, %v461
          %463 = vmatprep.mubr.f32.mxu0 0.0
          %464 = vmatmul.mubr.f32.gmra.mxu0 %v314
          %v465 = vpop.f32.mrf.mxu0
          %v466 = vadd.f32 0.0, %v465
          %v467 = vpop.f32.mrf.mxu0
          %v468 = vadd.f32 0.0, %v467
          %469 = vmatprep.mubr.f32.mxu0 0.0
          %470 = vmatmul.mubr.f32.gmra.mxu0 %v317
          %v471 = vpop.f32.mrf.mxu0
          %v472 = vadd.f32 0.0, %v471
          %v473 = vpop.f32.mrf.mxu0
          %v474 = vadd.f32 0.0, %v473
          %475 = vmatprep.mubr.f32.mxu0 0.0
          %476 = vmatmul.mubr.f32.gmra.mxu0 %v320
          %v477 = vpop.f32.mrf.mxu0
          %v478 = vadd.f32 0.0, %v477
          %v479 = vpop.f32.mrf.mxu0
          %v480 = vadd.f32 0.0, %v479
          %481 = vmatprep.mubr.f32.mxu0 0.0
          %482 = vmatmul.mubr.f32.gmra.mxu0 %v323
          %v483 = vpop.f32.mrf.mxu0
          %v484 = vadd.f32 0.0, %v483
          %v485 = vpop.f32.mrf.mxu0
          %v486 = vadd.f32 0.0, %v485
          %487 = vmatprep.mubr.f32.mxu0 0.0
          %488 = vmatmul.mubr.f32.gmra.mxu0 %v326
          %v489 = vpop.f32.mrf.mxu0
          %v490 = vadd.f32 0.0, %v489
          %v491 = vpop.f32.mrf.mxu0
          %v492 = vadd.f32 0.0, %v491
          %493 = vdwg.mxu0
          %v494 = vmul.f32 %v277, %v277
          %v496 = vcombine.high %v494, %v494
          %v498 = vsel %vm328, %v494, 0.0
          %v499 = vrot.slane %v498, 4
          %v500 = vadd.f32 %v498, %v499
          %v501 = vrot.slane %v500, 2
          %v502 = vadd.f32 %v500, %v501
          %v503 = vrot.slane %v502, 1
          %v504 = vadd.f32 %v502, %v503
          %v505 = vsel %vm328, %v496, 0.0
          %v506 = vrot.slane %v505, 4
          %v507 = vadd.f32 %v505, %v506
          %v508 = vrot.slane %v507, 2
          %v509 = vadd.f32 %v507, %v508
          %v510 = vrot.slane %v509, 1
          %v511 = vadd.f32 %v509, %v510
          %v512 = vadd.f32 %v222, %v504
          %v513 = vadd.f32 %v222, %v511
          %v514 = vadd.f32 %v225, %v504
          %v515 = vadd.f32 %v225, %v511
          %v516 = vadd.f32 %v228, %v504
          %v517 = vadd.f32 %v228, %v511
          %v518 = vadd.f32 %v231, %v504
          %v519 = vadd.f32 %v231, %v511
          %v520 = vadd.f32 %v234, %v504
          %v521 = vadd.f32 %v234, %v511
          %v522 = vadd.f32 %v237, %v504
          %v523 = vadd.f32 %v237, %v511
          %v524 = vadd.f32 %v240, %v504
          %v525 = vadd.f32 %v240, %v511
          %v526 = vadd.f32 %v243, %v504
          %v527 = vadd.f32 %v243, %v511
          %v528 = vadd.f32 %v246, %v504
          %v529 = vadd.f32 %v246, %v511
          %v530 = vadd.f32 %v249, %v504
          %v531 = vadd.f32 %v249, %v511
          %v532 = vadd.f32 %v252, %v504
          %v533 = vadd.f32 %v252, %v511
          %v534 = vadd.f32 %v255, %v504
          %v535 = vadd.f32 %v255, %v511
          %v536 = vadd.f32 %v258, %v504
          %v537 = vadd.f32 %v258, %v511
          %v538 = vadd.f32 %v261, %v504
          %v539 = vadd.f32 %v261, %v511
          %v540 = vadd.f32 %v264, %v504
          %v541 = vadd.f32 %v264, %v511
          %v542 = vadd.f32 %v267, %v504
          %v543 = vadd.f32 %v267, %v511
          %v544 = vmul.f32 %v400, 2.0
          %v545 = vmul.f32 %v402, 2.0
          %v546 = vmul.f32 %v406, 2.0
          %v547 = vmul.f32 %v408, 2.0
          %v548 = vmul.f32 %v412, 2.0
          %v549 = vmul.f32 %v414, 2.0
          %v550 = vmul.f32 %v418, 2.0
          %v551 = vmul.f32 %v420, 2.0
          %v552 = vmul.f32 %v424, 2.0
          %v553 = vmul.f32 %v426, 2.0
          %v554 = vmul.f32 %v430, 2.0
          %v555 = vmul.f32 %v432, 2.0
          %v556 = vmul.f32 %v436, 2.0
          %v557 = vmul.f32 %v438, 2.0
          %v558 = vmul.f32 %v442, 2.0
          %v559 = vmul.f32 %v444, 2.0
          %v560 = vmul.f32 %v448, 2.0
          %v561 = vmul.f32 %v450, 2.0
          %v562 = vmul.f32 %v454, 2.0
          %v563 = vmul.f32 %v456, 2.0
          %v564 = vmul.f32 %v460, 2.0
          %v565 = vmul.f32 %v462, 2.0
          %v566 = vmul.f32 %v466, 2.0
          %v567 = vmul.f32 %v468, 2.0
          %v568 = vmul.f32 %v472, 2.0
          %v569 = vmul.f32 %v474, 2.0
          %v570 = vmul.f32 %v478, 2.0
          %v571 = vmul.f32 %v480, 2.0
          %v572 = vmul.f32 %v484, 2.0
          %v573 = vmul.f32 %v486, 2.0
          %v574 = vmul.f32 %v490, 2.0
          %v575 = vmul.f32 %v492, 2.0
          %v576 = vsub.f32 %v512, %v544
          %v577 = vsub.f32 %v513, %v545
          %v578 = vsub.f32 %v514, %v546
          %v579 = vsub.f32 %v515, %v547
          %v580 = vsub.f32 %v516, %v548
          %v581 = vsub.f32 %v517, %v549
          %v582 = vsub.f32 %v518, %v550
          %v583 = vsub.f32 %v519, %v551
          %v584 = vsub.f32 %v520, %v552
          %v585 = vsub.f32 %v521, %v553
          %v586 = vsub.f32 %v522, %v554
          %v587 = vsub.f32 %v523, %v555
          %v588 = vsub.f32 %v524, %v556
          %v589 = vsub.f32 %v525, %v557
          %v590 = vsub.f32 %v526, %v558
          %v591 = vsub.f32 %v527, %v559
          %v592 = vsub.f32 %v528, %v560
          %v593 = vsub.f32 %v529, %v561
          %v594 = vsub.f32 %v530, %v562
          %v595 = vsub.f32 %v531, %v563
          %v596 = vsub.f32 %v532, %v564
          %v597 = vsub.f32 %v533, %v565
          %v598 = vsub.f32 %v534, %v566
          %v599 = vsub.f32 %v535, %v567
          %v600 = vsub.f32 %v536, %v568
          %v601 = vsub.f32 %v537, %v569
          %v602 = vsub.f32 %v538, %v570
          %v603 = vsub.f32 %v539, %v571
          %v604 = vsub.f32 %v540, %v572
          %v605 = vsub.f32 %v541, %v573
          %v606 = vsub.f32 %v542, %v574
          %v607 = vsub.f32 %v543, %v575
          %v608 = vmax.f32 %v576, 0.0
          %v609 = vmax.f32 %v577, 0.0
          %v610 = vmax.f32 %v578, 0.0
          %v611 = vmax.f32 %v579, 0.0
          %v612 = vmax.f32 %v580, 0.0
          %v613 = vmax.f32 %v581, 0.0
          %v614 = vmax.f32 %v582, 0.0
          %v615 = vmax.f32 %v583, 0.0
          %v616 = vmax.f32 %v584, 0.0
          %v617 = vmax.f32 %v585, 0.0
          %v618 = vmax.f32 %v586, 0.0
          %v619 = vmax.f32 %v587, 0.0
          %v620 = vmax.f32 %v588, 0.0
          %v621 = vmax.f32 %v589, 0.0
          %v622 = vmax.f32 %v590, 0.0
          %v623 = vmax.f32 %v591, 0.0
          %v624 = vmax.f32 %v592, 0.0
          %v625 = vmax.f32 %v593, 0.0
          %v626 = vmax.f32 %v594, 0.0
          %v627 = vmax.f32 %v595, 0.0
          %v628 = vmax.f32 %v596, 0.0
          %v629 = vmax.f32 %v597, 0.0
          %v630 = vmax.f32 %v598, 0.0
          %v631 = vmax.f32 %v599, 0.0
          %v632 = vmax.f32 %v600, 0.0
          %v633 = vmax.f32 %v601, 0.0
          %v634 = vmax.f32 %v602, 0.0
          %v635 = vmax.f32 %v603, 0.0
          %v636 = vmax.f32 %v604, 0.0
          %v637 = vmax.f32 %v605, 0.0
          %v638 = vmax.f32 %v606, 0.0
          %v639 = vmax.f32 %v607, 0.0
          %v640 = vmin.f32 %v608, %v612
          %v641 = vmin.f32 %v610, %v614
          %v642 = vmin.f32 %v640, %v616
          %v643 = vmin.f32 %v641, %v618
          %v644 = vmin.f32 %v642, %v620
          %v645 = vmin.f32 %v643, %v622
          %v646 = vmin.f32 %v644, %v624
          %v647 = vmin.f32 %v645, %v626
          %v648 = vmin.f32 %v646, %v628
          %v649 = vmin.f32 %v647, %v630
          %v650 = vmin.f32 %v648, %v632
          %v651 = vmin.f32 %v649, %v634
          %v652 = vmin.f32 %v650, %v636
          %v653 = vmin.f32 %v651, %v638
          %v654 = vmin.f32 %v652, %v653
          %v655 = vrot.slane %v654, 4
          %v656 = vmin.f32 %v654, %v655
          %v657 = vrot.slane %v656, 2
          %v658 = vmin.f32 %v656, %v657
          %v659 = vrot.slane %v658, 1
          %v660 = vmin.f32 %v658, %v659
          %v661 = vmin.f32 %v609, %v613
          %v662 = vmin.f32 %v611, %v615
          %v663 = vmin.f32 %v661, %v617
          %v664 = vmin.f32 %v662, %v619
          %v665 = vmin.f32 %v663, %v621
          %v666 = vmin.f32 %v664, %v623
          %v667 = vmin.f32 %v665, %v625
          %v668 = vmin.f32 %v666, %v627
          %v669 = vmin.f32 %v667, %v629
          %v670 = vmin.f32 %v668, %v631
          %v671 = vmin.f32 %v669, %v633
          %v672 = vmin.f32 %v670, %v635
          %v673 = vmin.f32 %v671, %v637
          %v674 = vmin.f32 %v672, %v639
          %v675 = vmin.f32 %v673, %v674
          %v676 = vrot.slane %v675, 4
          %v677 = vmin.f32 %v675, %v676
          %v678 = vrot.slane %v677, 2
          %v679 = vmin.f32 %v677, %v678
          %v680 = vrot.slane %v679, 1
          %v681 = vmin.f32 %v679, %v680
          %s682 = sshra.s32 %s269, 3
          %s683 = sand.u32 %s269, 7
          %s684 = sshra.s32 %s269, 3
          %s685 = sand.u32 %s269, 7
          %s686 = smul.u32 %s682, 2
          %s687 = smul.u32 %s686, 8
          %s688 = sadd.s32 %s687, %s685
          %s689 = scalar_lea.vmem [#allocation2], %s688
          %v690 = vld [vmem:[%s689] ss:$8 sm:$0x3]
          %v693 = vcombine.low %v660, %v681
          %v695 = vunpack.c.l.s4 1966171168
          %v696 = vunpack.c.0.s8 %v695
          %v697 = vlaneseq
          %v698 = vshrl.u32 %v697, 7
          %v699 = vsub.s32 %v696, %v698
          %v700 = vrot.slane %v693, %v699
          %v702 = vunpack.c.l.s4 1966171168
          %v703 = vunpack.c.0.s8 %v702
          %v704 = vlaneseq
          %v705 = vshrl.u32 %v704, 7
          %v706 = vsub.s32 %v703, %v705
          %v707 = vrot.slane %v700, %v706
          %v709 = vmin.f32 %v690, %v707
          %v710 = vlaneseq
          %vm711 = vcmp.ge.s32.totalorder %v710, 0
          %vm712 = vcmp.lt.s32.totalorder %v710, 256
          %vm713 = vmand %vm711, %vm712
          %714 = vst.msk [vmem:[%s689] ss:$8 sm:$0x3] %vm713, %v709
          %715 = vst.msk [vmem:[%s689] ss:$8 sm:$0x0] %vm713, %v709
        $region37: #{tpu_custom_call.1} parent=27 // loop_footer
          %s273 = sadd.s32 1, %s269
        $region38: #{tpu_custom_call.1} parent=27 // loop_footer_branch
          %268 = sbr.rel target = $region34
        $region39: #{tpu_custom_call.1} parent=27 // loop_exit
          _
        // Predicated region
        $region40: #{tpu_custom_call.1} parent=27 // pred_check
          %p716 = pneg %p181
        $region41: #{tpu_custom_call.1} parent=27 // pred_check_branch
          %718 = sbr.rel (%p716) target = $region43
        $region42: #{tpu_custom_call.1} parent=27 // pred_region
          %v719 = vld [vmem:[#allocation2] sm:$0xff]
          %v720 = vld [vmem:[#allocation2 + $0x8] sm:$0xff]
          %v721 = vrsqrt.pop %v719
          %v722 = vmul.f32 %v719, %v721
          %vm723 = vcmp.eq.f32.partialorder %v719, inf
          %v724 = vsel %vm723, %v719, %v722
          %vm725 = vcmp.eq.f32.partialorder %v719, 0.0
          %v726 = vand.u32 %v719, 2147483648
          %v727 = vsel %vm725, %v726, %v724
          %v728 = vrsqrt.pop %v720
          %v729 = vmul.f32 %v720, %v728
          %vm730 = vcmp.eq.f32.partialorder %v720, inf
          %v731 = vsel %vm730, %v720, %v729
          %vm732 = vcmp.eq.f32.partialorder %v720, 0.0
          %v733 = vand.u32 %v720, 2147483648
          %v734 = vsel %vm732, %v733, %v731
          %v735 = vsub.f32 0.1875, %v727
          %v736 = vsub.f32 0.1875, %v734
          %v737 = vmax.f32 %v735, 0.0
          %v738 = vmax.f32 %v736, 0.0
          %739 = vst [vmem:[%s167] sm:$0xff] %v737
          %740 = vst [vmem:[%s167 + $0x8] sm:$0xff] %v738
        $region43: #{tpu_custom_call.1} parent=27 // pred_fallthru
          _
        %s741 = sand.u32 %s88, 1
        %s742 = scalar_lea.sflag [#allocation4], %s741
        %s743 = sand.u32 %s88, 1
        %s744 = smul.addr %s743, 16
        %s745 = scalar_lea.vmem [#allocation3], %s744
        // Predicated region
        $region44: #{tpu_custom_call.1} parent=27 // pred_check
          %p746 = pneg %p98
        $region45: #{tpu_custom_call.1} parent=27 // pred_check_branch
          %748 = sbr.rel (%p746) target = $region47
        $region46: #{tpu_custom_call.1} parent=27 // pred_region
          %s750 = ssub.s32 256, 256
          %751 = vsyncadd %s742, %s750
          %s752 = smul.addr %s20, 2
          %s753 = smul.addr %s752, 128
          %s754 = scalar_lea.hbm %s2, %s753
          %s756 = sshll.u32 %s745, 4
          %s757 = int_to_ptr.vmem [resolvable:$true] %s756
          %759 = dma.vmem_to_hbm [thread:$0]  %s757, 256, %s754, %s742
        $region47: #{tpu_custom_call.1} parent=27 // pred_fallthru
          _
      $region28: #{tpu_custom_call.1} parent=5 // pred_fallthru
        _
      %p760 = scmp.le.s32.totalorder 2, %s11
      // Predicated region
      $region48: #{tpu_custom_call.1} parent=5 // pred_check
        %p761 = pneg %p760
      $region49: #{tpu_custom_call.1} parent=5 // pred_check_branch
        %763 = sbr.rel (%p761) target = $region51
      $region50: #{tpu_custom_call.1} parent=5 // pred_region
        %s764 = ssub.s32 %s11, 2
        // Predicated region
        $region52: #{tpu_custom_call.1} parent=50 // pred_check
          %p765 = pneg %p104
        $region53: #{tpu_custom_call.1} parent=50 // pred_check_branch
          %767 = sbr.rel (%p765) target = $region55
        $region54: #{tpu_custom_call.1} parent=50 // pred_region
          %s768 = sand.u32 %s89, 1
          %s769 = scalar_lea.sflag [#allocation4], %s768
          %s770 = sand.u32 %s89, 1
          %s771 = smul.addr %s770, 16
          %s772 = scalar_lea.vmem [#allocation3], %s771
          %773 = dma.done %s769, 256
        $region55: #{tpu_custom_call.1} parent=50 // pred_fallthru
          _
      $region51: #{tpu_custom_call.1} parent=5 // pred_fallthru
        _
    $region6: #{tpu_custom_call.1} parent=1 // loop_footer
      %s15 = sadd.s32 1, %s11
    $region7: #{tpu_custom_call.1} parent=1 // loop_footer_branch
      %10 = sbr.rel target = $region3
    $region8: #{tpu_custom_call.1} parent=1 // loop_exit
      _
    %774 = vsyncpa [#allocation4], 1
    %s775 = scalar_lea.sflag [#allocation4], 1
    %776 = vsyncpa %s775, 1

</llo_original>
